<compile_context>
chip_gen: v5e
topology: v5e:2x2
jax: 0.10.0
libtpu: 0.0.40
codegen_flags: <defaults>
</compile_context>

<pallas_src>
import math

import jax
import jax.numpy as jnp
from jax.experimental import pallas as pl
from jax.experimental.pallas import tpu as pltpu


def _mlp_kernel(x_ref, w1_ref, b1_ref, w2_ref, b2_ref, o_ref):
    # x_ref: (tm, cin_p)   w1_ref: (cin_p, cout_p)   b1_ref/b2_ref: (1, cout_p)
    # w2_ref: (cout_p, cout_p)   o_ref: (tm, cout_p)
    h = jnp.dot(x_ref[...], w1_ref[...], preferred_element_type=jnp.float32)
    h = jnp.maximum(h + b1_ref[...], 0.0)            # bias + ReLU in f32 (VPU)
    o = jnp.dot(h.astype(w2_ref.dtype), w2_ref[...],
                preferred_element_type=jnp.float32)
    o_ref[...] = (o + b2_ref[...]).astype(o_ref.dtype)


def _round_up(x, n):
    return -(-x // n) * n


def _row_pack_factor(c_out, m):
    """Smallest row-pack factor p making p*c_out a multiple of 128 lanes."""
    if c_out % 128 == 0:
        return 1
    p = 128 // math.gcd(c_out, 128)
    if p <= 8 and m % p == 0:
        return p
    return 1


def template_single_embedder(x, w1, b1, w2, b2, *, block_rows=2048, io_dtype=None):
    """x: [*, N_templ, N_res, c_in] -> [*, N_templ, N_res, c_out].

    w1: (c_out, c_in)  (PyTorch Linear convention), b1: (c_out,)
    w2: (c_out, c_out), b2: (c_out,)
    block_rows: logical rows processed per grid step (multiple of 8; sweepable).
    io_dtype:   optional cast for x / weights (e.g. jnp.bfloat16) to halve HBM
                traffic; accumulation and bias/ReLU stay f32.
    """
    c_in = x.shape[-1]
    c_out = w1.shape[0]
    lead = x.shape[:-1]
    m = 1
    for d in lead:
        m *= d

    if io_dtype is not None:
        x = x.astype(io_dtype)
        w1 = w1.astype(io_dtype)
        w2 = w2.astype(io_dtype)
    out_dtype = x.dtype

    # ---- lane-dense row packing (free row-major views + tiny kron weights) ---
    p = _row_pack_factor(c_out, m)
    mp = m // p
    cin_p, cout_p = p * c_in, p * c_out

    x_p = x.reshape(mp, cin_p)                       # free view of (m, c_in)
    w1t = w1.T                                       # (c_in, c_out)
    w2t = w2.T                                       # (c_out, c_out)
    if p > 1:
        w1_p = jnp.kron(jnp.eye(p, dtype=w1t.dtype), w1t)   # (cin_p, cout_p)
        w2_p = jnp.kron(jnp.eye(p, dtype=w2t.dtype), w2t)   # (cout_p, cout_p)
        b1_p = jnp.tile(b1.astype(jnp.float32), p)
        b2_p = jnp.tile(b2.astype(jnp.float32), p)
    else:
        w1_p, w2_p = w1t, w2t
        b1_p = b1.astype(jnp.float32)
        b2_p = b2.astype(jnp.float32)
    b1_p = b1_p.reshape(1, cout_p)
    b2_p = b2_p.reshape(1, cout_p)

    # ---- row-tile choice ------------------------------------------------------
    tm = max(8, (min(block_rows // p, _round_up(mp, 8)) // 8) * 8)
    # Keep a few grid steps when there is enough work so "parallel" rows can be
    # split across TensorCores (megacore / v7x), without shrinking tiles so much
    # that per-step overhead dominates again.
    min_steps = 4
    if pl.cdiv(mp, tm) < min_steps and mp >= min_steps * 256:
        tm = _round_up(pl.cdiv(mp, min_steps), 8)

    grid = (pl.cdiv(mp, tm),)

    itemsize_x = jnp.dtype(x_p.dtype).itemsize
    itemsize_o = jnp.dtype(out_dtype).itemsize
    itemsize_w = jnp.dtype(w1_p.dtype).itemsize
    cost = pl.CostEstimate(
        flops=2 * mp * (cin_p * cout_p + cout_p * cout_p),
        transcendentals=0,
        bytes_accessed=(mp * cin_p * itemsize_x
                        + mp * cout_p * itemsize_o
                        + (cin_p * cout_p + cout_p * cout_p) * itemsize_w
                        + 2 * cout_p * 4),
    )

    out_p = pl.pallas_call(
        _mlp_kernel,
        out_shape=jax.ShapeDtypeStruct((mp, cout_p), out_dtype),
        grid_spec=pltpu.PrefetchScalarGridSpec(
            num_scalar_prefetch=0,
            grid=grid,
            in_specs=[
                pl.BlockSpec((tm, cin_p), lambda i: (i, 0)),
                pl.BlockSpec((cin_p, cout_p), lambda i: (0, 0)),   # resident
                pl.BlockSpec((1, cout_p), lambda i: (0, 0)),       # resident
                pl.BlockSpec((cout_p, cout_p), lambda i: (0, 0)),  # resident
                pl.BlockSpec((1, cout_p), lambda i: (0, 0)),       # resident
            ],
            out_specs=pl.BlockSpec((tm, cout_p), lambda i: (i, 0)),
        ),
        compiler_params=pltpu.CompilerParams(
            dimension_semantics=("parallel",)),
        cost_estimate=cost,
    )(x_p, w1_p, b1_p, w2_p, b2_p)

    # (mp, p*c_out) is bit-identical to (m, c_out); reshapes below are free.
    return out_p.reshape(*lead, c_out)


def _he_trunc_normal(key, shape):
    # he_normal_init_: truncated normal (a=-2, b=2) with std = sqrt(2/fan_in)/truncnorm_std
    fan_in = shape[1]
    trunc_std = 0.87962566103423978  # std of standard normal truncated to [-2, 2]
    std = jnp.sqrt(2.0 / max(1, fan_in)) / trunc_std
    return jax.random.truncated_normal(key, -2.0, 2.0, shape, jnp.float32) * std


if __name__ == "__main__":
    # Small shapes: batch=2, N_templ=4, N_res=8, c_in=32, c_out=64
    B, NT, NR, C_IN, C_OUT = 2, 4, 8, 32, 64

    key = jax.random.PRNGKey(0)
    kx, k1, k2, kx2 = jax.random.split(key, 4)

    x = jax.random.normal(kx, (B, NT, NR, C_IN), jnp.float32)

    # Deterministic parameter init matching Linear(init='relu'): truncated-normal
    # he init for weights, zeros for biases.
    w1 = _he_trunc_normal(k1, (C_OUT, C_IN))
    b1 = jnp.zeros((C_OUT,), jnp.float32)
    w2 = _he_trunc_normal(k2, (C_OUT, C_OUT))
    b2 = jnp.zeros((C_OUT,), jnp.float32)

    out = template_single_embedder(x, w1, b1, w2, b2)
    jax.block_until_ready(out)

    ref = jnp.maximum(x @ w1.T + b1, 0.0) @ w2.T + b2
    assert out.shape == (B, NT, NR, C_OUT)
    assert jnp.allclose(out, ref, atol=1e-5, rtol=1e-5)

    # Ragged-row sanity check (row count not a multiple of the tile): exercises
    # the no-pad path where Pallas masks the partial last block.
    NR2 = 5
    x2 = jax.random.normal(kx2, (B, NT, NR2, C_IN), jnp.float32)
    out2 = template_single_embedder(x2, w1, b1, w2, b2)
    jax.block_until_ready(out2)
    ref2 = jnp.maximum(x2 @ w1.T + b1, 0.0) @ w2.T + b2
    assert out2.shape == (B, NT, NR2, C_OUT)
    assert jnp.allclose(out2, ref2, atol=1e-5, rtol=1e-5)

    print("KERNEL_OK")
</pallas_src>

<mosaic_0001>
module attributes {stable_mosaic.version = 11 : i64} {
  func.func @_mlp_kernel(%arg0: i32, %arg1: memref<32x64xf32, #tpu.memory_space<vmem>>, %arg2: memref<64x128xf32, #tpu.memory_space<vmem>>, %arg3: memref<1x128xf32, #tpu.memory_space<vmem>>, %arg4: memref<128x128xf32, #tpu.memory_space<vmem>>, %arg5: memref<1x128xf32, #tpu.memory_space<vmem>>, %arg6: memref<32x128xf32, #tpu.memory_space<vmem>>) attributes {dimension_semantics = [#tpu.dimension_semantics<parallel>], iteration_bounds = array<i64: 1>, scalar_prefetch = 0 : i64, scratch_operands = 0 : i64, tpu.core_type = #tpu.core_type<tc>, window_params = [{transform_indices = @transform_0, window_bounds = array<i64: 32, 64>}, {pipeline_mode = #tpu.pipeline_mode<synchronous>, transform_indices = @transform_1, window_bounds = array<i64: 64, 128>}, {pipeline_mode = #tpu.pipeline_mode<synchronous>, transform_indices = @transform_2, window_bounds = array<i64: 1, 128>}, {pipeline_mode = #tpu.pipeline_mode<synchronous>, transform_indices = @transform_3, window_bounds = array<i64: 128, 128>}, {pipeline_mode = #tpu.pipeline_mode<synchronous>, transform_indices = @transform_4, window_bounds = array<i64: 1, 128>}, {transform_indices = @transform_5, window_bounds = array<i64: 32, 128>}]} {
    %c0 = arith.constant 0 : index
    %c0_0 = arith.constant 0 : index
    %0 = vector.load %arg1[%c0, %c0_0] : memref<32x64xf32, #tpu.memory_space<vmem>>, vector<32x64xf32>
    %c0_1 = arith.constant 0 : index
    %c0_2 = arith.constant 0 : index
    %1 = vector.load %arg2[%c0_1, %c0_2] : memref<64x128xf32, #tpu.memory_space<vmem>>, vector<64x128xf32>
    %cst = arith.constant dense<0.000000e+00> : vector<32x128xf32>
    %2 = tpu.matmul %0, %1, %cst {dimension_numbers = #tpu.dot_dimension_numbers<[1], [0], [0], [1], [0, 0, 1, 1], [], []>} : vector<32x64xf32>, vector<64x128xf32>, vector<32x128xf32> -> vector<32x128xf32>
    %c0_3 = arith.constant 0 : index
    %c0_4 = arith.constant 0 : index
    %3 = vector.load %arg3[%c0_3, %c0_4] : memref<1x128xf32, #tpu.memory_space<vmem>>, vector<1x128xf32>
    %4 = vector.broadcast %3 : vector<1x128xf32> to vector<32x128xf32>
    %5 = arith.addf %2, %4 : vector<32x128xf32>
    %cst_5 = arith.constant 0.000000e+00 : f32
    %6 = vector.broadcast %cst_5 : f32 to vector<32x128xf32>
    %7 = arith.maximumf %5, %6 : vector<32x128xf32>
    %c0_6 = arith.constant 0 : index
    %c0_7 = arith.constant 0 : index
    %8 = vector.load %arg4[%c0_6, %c0_7] : memref<128x128xf32, #tpu.memory_space<vmem>>, vector<128x128xf32>
    %cst_8 = arith.constant dense<0.000000e+00> : vector<32x128xf32>
    %9 = tpu.matmul %7, %8, %cst_8 {dimension_numbers = #tpu.dot_dimension_numbers<[1], [0], [0], [1], [0, 0, 1, 1], [], []>} : vector<32x128xf32>, vector<128x128xf32>, vector<32x128xf32> -> vector<32x128xf32>
    %c0_9 = arith.constant 0 : index
    %c0_10 = arith.constant 0 : index
    %10 = vector.load %arg5[%c0_9, %c0_10] : memref<1x128xf32, #tpu.memory_space<vmem>>, vector<1x128xf32>
    %11 = vector.broadcast %10 : vector<1x128xf32> to vector<32x128xf32>
    %12 = arith.addf %9, %11 : vector<32x128xf32>
    %c0_11 = arith.constant 0 : index
    %c0_12 = arith.constant 0 : index
    %13 = vector.load %arg6[%c0_11, %c0_12] : memref<32x128xf32, #tpu.memory_space<vmem>>, vector<32x128xf32>
    tpu.vector_store %arg6[%c0_11, %c0_12], %12 {strides = array<i32>} : memref<32x128xf32, #tpu.memory_space<vmem>>, vector<32x128xf32>,
    return
  }
  func.func @transform_0(%arg0: i32) -> (i32, i32) {
    %c0_i32 = arith.constant 0 : i32
    %c0_i32_0 = arith.constant 0 : i32
    return %arg0, %c0_i32 : i32, i32
  }
  func.func @transform_1(%arg0: i32) -> (i32, i32) {
    %c0_i32 = arith.constant 0 : i32
    %c0_i32_0 = arith.constant 0 : i32
    %c0_i32_1 = arith.constant 0 : i32
    return %c0_i32, %c0_i32_0 : i32, i32
  }
  func.func @transform_2(%arg0: i32) -> (i32, i32) {
    %c0_i32 = arith.constant 0 : i32
    %c0_i32_0 = arith.constant 0 : i32
    %c0_i32_1 = arith.constant 0 : i32
    return %c0_i32, %c0_i32_0 : i32, i32
  }
  func.func @transform_3(%arg0: i32) -> (i32, i32) {
    %c0_i32 = arith.constant 0 : i32
    %c0_i32_0 = arith.constant 0 : i32
    %c0_i32_1 = arith.constant 0 : i32
    return %c0_i32, %c0_i32_0 : i32, i32
  }
  func.func @transform_4(%arg0: i32) -> (i32, i32) {
    %c0_i32 = arith.constant 0 : i32
    %c0_i32_0 = arith.constant 0 : i32
    %c0_i32_1 = arith.constant 0 : i32
    return %c0_i32, %c0_i32_0 : i32, i32
  }
  func.func @transform_5(%arg0: i32) -> (i32, i32) {
    %c0_i32 = arith.constant 0 : i32
    %c0_i32_0 = arith.constant 0 : i32
    return %arg0, %c0_i32 : i32, i32
  }
}

</mosaic_0001>

<llo_original>
// kernel: tpu_custom_call.1
$region0: #{tpu_custom_call.1}
  #allocation0 [shape = 'u32[]', space=smem, size = 0x4, offset = 0x4, fixed_abs, tag = 'smem constant byte address 0x4 - core index']
  #allocation1 [shape = 'u32[72,128]{1,0:T(1,128)}', space=vmem, size = 0x9000, scoped, tag = 'internal scratch']
  %s0 = inlined_call_operand.hbm [shape: f32[32,64], index: 0, kind: input, shape index: {}]
  %s1 = inlined_call_operand.hbm [shape: f32[64,128], index: 1, kind: input, shape index: {}]
  %s2 = inlined_call_operand.vmem [shape: f32[1,128], index: 2, kind: input, shape index: {}]
  %s3 = inlined_call_operand.hbm [shape: f32[128,128], index: 3, kind: input, shape index: {}]
  %s4 = inlined_call_operand.vmem [shape: f32[1,128], index: 4, kind: input, shape index: {}]
  %s5 = inlined_call_operand.hbm [shape: f32[32,128], index: 5, kind: output, shape index: {}]
  %s6 = sld [smem:[#allocation0]]
  $region42: #{tpu_custom_call.1} parent=0
    _
  %s8 = ssub.s32 1, %s6
  %s9 = scalar_select 0, %s8, %s6
  $region1: #{tpu_custom_call.1} parent=0
    #allocation2 [shape = 'u8[16384]{0}', space=vmem, size = 0x4000, scoped, tag = 'input window, operand 0, single buffered']
    #allocation3 [shape = 's32[1]{0}', space=sflag, size = 0x4, scoped, tag = 'scoped memory for tpu_custom_call.1']
    #allocation4 [shape = 's32[1]{0}', space=sflag, size = 0x4, scoped, tag = 'scoped memory for tpu_custom_call.1']
    #allocation5 [shape = 'u8[32768]{0}', space=vmem, size = 0x8000, scoped, tag = 'input window, operand 1, single buffered']
    #allocation6 [shape = 's32[1]{0}', space=sflag, size = 0x4, scoped, tag = 'scoped memory for tpu_custom_call.1']
    #allocation7 [shape = 'u8[65536]{0}', space=vmem, size = 0x10000, scoped, tag = 'input window, operand 3, single buffered']
    #allocation8 [shape = 'u8[16384]{0}', space=vmem, size = 0x4000, scoped, tag = 'output window, operand 0, single buffered']
    %10 = vsyncpa [#allocation3], 0
    %11 = vsyncpa [#allocation6], 0
    %12 = vsyncpa [#allocation4], 0
    // Predicated region
    $region2: #{tpu_custom_call.1} parent=1 // pred_check
      _
    $region3: #{tpu_custom_call.1} parent=1 // pred_check_branch
      %14 = sbr.rel (0) target = $region5
    $region4: #{tpu_custom_call.1} parent=1 // pred_region
      %16 = vsyncadd [#allocation3], 0
      %s17 = sshll.u32 %s0, 4
      %s18 = int_to_ptr.hbm [resolvable:$true] %s17
      %s19 = sshll.u32 [#allocation2], 4
      %s20 = int_to_ptr.vmem [resolvable:$true] %s19
      %25 = dma.hbm_to_vmem [thread:$0]  %s18, 512, %s20, [#allocation3], 128, 128, 8
    $region5: #{tpu_custom_call.1} parent=1 // pred_fallthru
      _
    // Predicated region
    $region6: #{tpu_custom_call.1} parent=1 // pred_check
      _
    $region7: #{tpu_custom_call.1} parent=1 // pred_check_branch
      %27 = sbr.rel (0) target = $region9
    $region8: #{tpu_custom_call.1} parent=1 // pred_region
      %29 = vsyncadd [#allocation6], 0
      %s30 = sshll.u32 %s1, 4
      %s31 = int_to_ptr.hbm [resolvable:$true] %s30
      %s32 = sshll.u32 [#allocation5], 4
      %s33 = int_to_ptr.vmem [resolvable:$true] %s32
      %38 = dma.hbm_to_vmem [thread:$0]  %s31, 1024, %s33, [#allocation6], 128, 128, 8
    $region9: #{tpu_custom_call.1} parent=1 // pred_fallthru
      _
    // Predicated region
    $region10: #{tpu_custom_call.1} parent=1 // pred_check
      _
    $region11: #{tpu_custom_call.1} parent=1 // pred_check_branch
      %40 = sbr.rel (0) target = $region13
    $region12: #{tpu_custom_call.1} parent=1 // pred_region
      _
    $region13: #{tpu_custom_call.1} parent=1 // pred_fallthru
      _
    // Predicated region
    $region14: #{tpu_custom_call.1} parent=1 // pred_check
      _
    $region15: #{tpu_custom_call.1} parent=1 // pred_check_branch
      %42 = sbr.rel (0) target = $region17
    $region16: #{tpu_custom_call.1} parent=1 // pred_region
      %44 = vsyncadd [#allocation6], 0
      %s45 = sshll.u32 %s3, 4
      %s46 = int_to_ptr.hbm [resolvable:$true] %s45
      %s47 = sshll.u32 [#allocation7], 4
      %s48 = int_to_ptr.vmem [resolvable:$true] %s47
      %53 = dma.hbm_to_vmem [thread:$0]  %s46, 2048, %s48, [#allocation6], 128, 128, 8
    $region17: #{tpu_custom_call.1} parent=1 // pred_fallthru
      _
    // Predicated region
    $region18: #{tpu_custom_call.1} parent=1 // pred_check
      _
    $region19: #{tpu_custom_call.1} parent=1 // pred_check_branch
      %55 = sbr.rel (0) target = $region21
    $region20: #{tpu_custom_call.1} parent=1 // pred_region
      _
    $region21: #{tpu_custom_call.1} parent=1 // pred_fallthru
      _
    // Predicated region
    $region22: #{tpu_custom_call.1} parent=1 // pred_check
      _
    $region23: #{tpu_custom_call.1} parent=1 // pred_check_branch
      %57 = sbr.rel (0) target = $region25
    $region24: #{tpu_custom_call.1} parent=1 // pred_region
      %59 = dma.done [#allocation3], 512
    $region25: #{tpu_custom_call.1} parent=1 // pred_fallthru
      _
    // Predicated region
    $region26: #{tpu_custom_call.1} parent=1 // pred_check
      _
    $region27: #{tpu_custom_call.1} parent=1 // pred_check_branch
      %61 = sbr.rel (0) target = $region29
    $region28: #{tpu_custom_call.1} parent=1 // pred_region
      %63 = dma.done [#allocation6], 1024
    $region29: #{tpu_custom_call.1} parent=1 // pred_fallthru
      _
    // Predicated region
    $region30: #{tpu_custom_call.1} parent=1 // pred_check
      _
    $region31: #{tpu_custom_call.1} parent=1 // pred_check_branch
      %65 = sbr.rel (0) target = $region33
    $region32: #{tpu_custom_call.1} parent=1 // pred_region
      %67 = dma.done [#allocation6], 2048
    $region33: #{tpu_custom_call.1} parent=1 // pred_fallthru
      _
    %v68 = vld [vmem:[#allocation2] sm:$0xff]
    %v69 = vld [vmem:[#allocation2 + $0x8] sm:$0xff]
    %v70 = vld [vmem:[#allocation2 + $0x10] sm:$0xff]
    %v71 = vld [vmem:[#allocation2 + $0x18] sm:$0xff]
    %v72 = vld [vmem:[#allocation5] sm:$0xff]
    %v73 = vld [vmem:[#allocation5 + $0x8] sm:$0xff]
    %v74 = vld [vmem:[#allocation5 + $0x10] sm:$0xff]
    %v75 = vld [vmem:[#allocation5 + $0x18] sm:$0xff]
    %v76 = vld [vmem:[#allocation5 + $0x20] sm:$0xff]
    %v77 = vld [vmem:[#allocation5 + $0x28] sm:$0xff]
    %v78 = vld [vmem:[#allocation5 + $0x30] sm:$0xff]
    %v79 = vld [vmem:[#allocation5 + $0x38] sm:$0xff]
    %v80 = vld [vmem:[%s2] sm:$0x1]
    %v82 = vperm.slane %v80, 0
    %vm84 = vcmask 523264
    %v86 = vsel %vm84, %v68, 0
    %v89 = vsel %vm84, %v69, 0
    %v92 = vsel %vm84, %v70, 0
    %v95 = vsel %vm84, %v71, 0
    %97 = vmatpush.msra.mxu0 0.0
    %98 = vmatpush.msra.mxu0 0.0
    %99 = vmatpush.msra.mxu0 0.0
    %100 = vmatpush.msra.mxu0 0.0
    %101 = vmatpush.msra.mxu0 0.0
    %102 = vmatpush.msra.mxu0 0.0
    %103 = vmatpush.msra.mxu0 0.0
    %104 = vmatpush.msra.mxu0 0.0
    %105 = vmatpush.msra.mxu0 %v79
    %106 = vmatpush.msra.mxu0 %v78
    %107 = vmatpush.msra.mxu0 %v77
    %108 = vmatpush.msra.mxu0 %v76
    %109 = vmatpush.msra.mxu0 %v75
    %110 = vmatpush.msra.mxu0 %v74
    %111 = vmatpush.msra.mxu0 %v73
    %112 = vmatpush.msra.mxu0 %v72
    %113 = vmatmul.f32.gmra.mxu0 %v86
    %v114 = vpop.f32.mrf.mxu0
    %v115 = vadd.f32 %v82, %v114
    %116 = vmatmul.f32.gmra.mxu0 %v89
    %v117 = vpop.f32.mrf.mxu0
    %v118 = vadd.f32 %v82, %v117
    %119 = vmatmul.f32.gmra.mxu0 %v92
    %v120 = vpop.f32.mrf.mxu0
    %v121 = vadd.f32 %v82, %v120
    %122 = vmatmul.f32.gmra.mxu0 %v95
    %v123 = vpop.f32.mrf.mxu0
    %v124 = vadd.f32 %v82, %v123
    %125 = vdwg.mxu0
    %v126 = vmax.f32 %v115, 0.0
    %v127 = vmax.f32 %v118, 0.0
    %v128 = vmax.f32 %v121, 0.0
    %v129 = vmax.f32 %v124, 0.0
    %v130 = vld [vmem:[#allocation7] sm:$0xff]
    %v131 = vld [vmem:[#allocation7 + $0x8] sm:$0xff]
    %v132 = vld [vmem:[#allocation7 + $0x10] sm:$0xff]
    %v133 = vld [vmem:[#allocation7 + $0x18] sm:$0xff]
    %v134 = vld [vmem:[#allocation7 + $0x20] sm:$0xff]
    %v135 = vld [vmem:[#allocation7 + $0x28] sm:$0xff]
    %v136 = vld [vmem:[#allocation7 + $0x30] sm:$0xff]
    %v137 = vld [vmem:[#allocation7 + $0x38] sm:$0xff]
    %v138 = vld [vmem:[#allocation7 + $0x40] sm:$0xff]
    %v139 = vld [vmem:[#allocation7 + $0x48] sm:$0xff]
    %v140 = vld [vmem:[#allocation7 + $0x50] sm:$0xff]
    %v141 = vld [vmem:[#allocation7 + $0x58] sm:$0xff]
    %v142 = vld [vmem:[#allocation7 + $0x60] sm:$0xff]
    %v143 = vld [vmem:[#allocation7 + $0x68] sm:$0xff]
    %v144 = vld [vmem:[#allocation7 + $0x70] sm:$0xff]
    %v145 = vld [vmem:[#allocation7 + $0x78] sm:$0xff]
    %v146 = vld [vmem:[%s4] sm:$0x1]
    %v148 = vperm.slane %v146, 0
    %150 = vmatpush.msra.mxu0 %v145
    %151 = vmatpush.msra.mxu0 %v144
    %152 = vmatpush.msra.mxu0 %v143
    %153 = vmatpush.msra.mxu0 %v142
    %154 = vmatpush.msra.mxu0 %v141
    %155 = vmatpush.msra.mxu0 %v140
    %156 = vmatpush.msra.mxu0 %v139
    %157 = vmatpush.msra.mxu0 %v138
    %158 = vmatpush.msra.mxu0 %v137
    %159 = vmatpush.msra.mxu0 %v136
    %160 = vmatpush.msra.mxu0 %v135
    %161 = vmatpush.msra.mxu0 %v134
    %162 = vmatpush.msra.mxu0 %v133
    %163 = vmatpush.msra.mxu0 %v132
    %164 = vmatpush.msra.mxu0 %v131
    %165 = vmatpush.msra.mxu0 %v130
    %166 = vmatmul.f32.gmra.mxu0 %v126
    %v167 = vpop.f32.mrf.mxu0
    %v168 = vadd.f32 %v148, %v167
    %169 = vmatmul.f32.gmra.mxu0 %v127
    %v170 = vpop.f32.mrf.mxu0
    %v171 = vadd.f32 %v148, %v170
    %172 = vmatmul.f32.gmra.mxu0 %v128
    %v173 = vpop.f32.mrf.mxu0
    %v174 = vadd.f32 %v148, %v173
    %175 = vmatmul.f32.gmra.mxu0 %v129
    %v176 = vpop.f32.mrf.mxu0
    %v177 = vadd.f32 %v148, %v176
    %178 = vdwg.mxu0
    %179 = vst [vmem:[#allocation8] sm:$0xff] %v168
    %180 = vst [vmem:[#allocation8 + $0x8] sm:$0xff] %v171
    %181 = vst [vmem:[#allocation8 + $0x10] sm:$0xff] %v174
    %182 = vst [vmem:[#allocation8 + $0x18] sm:$0xff] %v177
    // Predicated region
    $region34: #{tpu_custom_call.1} parent=1 // pred_check
      _
    $region35: #{tpu_custom_call.1} parent=1 // pred_check_branch
      %184 = sbr.rel (0) target = $region37
    $region36: #{tpu_custom_call.1} parent=1 // pred_region
      %186 = vsyncadd [#allocation4], 0
      %s187 = sshll.u32 [#allocation8], 4
      %s188 = int_to_ptr.vmem [resolvable:$true] %s187
      %s189 = sshll.u32 %s5, 4
      %s190 = int_to_ptr.hbm [resolvable:$true] %s189
      %195 = dma.vmem_to_hbm [thread:$0]  %s188, 512, %s190, [#allocation4], 128, 128, 8
    $region37: #{tpu_custom_call.1} parent=1 // pred_fallthru
      _
    // Predicated region
    $region38: #{tpu_custom_call.1} parent=1 // pred_check
      _
    $region39: #{tpu_custom_call.1} parent=1 // pred_check_branch
      %197 = sbr.rel (0) target = $region41
    $region40: #{tpu_custom_call.1} parent=1 // pred_region
      %199 = dma.done [#allocation4], 512
    $region41: #{tpu_custom_call.1} parent=1 // pred_fallthru
      _
    %200 = vsyncpa [#allocation3], 1
    %201 = vsyncpa [#allocation6], 1
    %202 = vsyncpa [#allocation4], 1

</llo_original>
